<compile_context>
chip_gen: v7x
topology: tpu7x:2x2x1
jax: 0.10.0
libtpu: 0.0.40
codegen_flags: <defaults>
</compile_context>

<pallas_src>
import functools

import jax
import jax.numpy as jnp
from jax import lax
from jax.experimental import pallas as pl
from jax.experimental.pallas import tpu as pltpu


def _round_up(x, m):
    return (x + m - 1) // m * m


def _cdiv(a, b):
    return (a + b - 1) // b


def _vmem_capacity_bytes(default=64 << 20):
    try:
        cap = getattr(pltpu.get_tpu_info(), "vmem_capacity_bytes", None)
        if cap:
            return int(cap)
    except Exception:
        pass
    return default


def _project_kernel(h_ref, w_ref, hw_ref):
    # h_ref : (tp, D_in)      feature row tile (f32)
    # w_ref : (D_out, D_in)   PyTorch Linear weight (no wrapper transpose)
    # hw_ref: (tp, D_out)     h @ W^T   (stored in mxu dtype, single rounding)
    hw = lax.dot_general(
        h_ref[...], w_ref[...],
        dimension_numbers=(((1,), (1,)), ((), ())),   # contract D_in with D_in
        preferred_element_type=jnp.float32)
    hw_ref[...] = hw.astype(hw_ref.dtype)


def _agg_relu_kernel(adj_ref, hw_ref, o_ref, acc_ref, *,
                     tk, n_valid_cols, hw_resident, mxu_dtype):
    # adj_ref: (tm, tk)          adjacency tile, original HBM dtype (f32)
    # hw_ref : (np_k, D_out) if hw_resident else (tk, D_out)
    # o_ref  : (tm, D_out)       output tile
    # acc_ref: (tm, D_out)       f32 accumulator (VMEM scratch)
    k = pl.program_id(1)

    @pl.when(k == 0)
    def _init():
        acc_ref[...] = jnp.zeros_like(acc_ref)

    a = adj_ref[...]
    if n_valid_cols is not None:
        # Ragged reduction tail: columns >= N in the last K tile hold
        # unspecified data (partial block read) — zero them before the matmul.
        col = lax.broadcasted_iota(jnp.int32, a.shape, 1) + k * tk
        a = jnp.where(col < n_valid_cols, a, 0.0)
    a = a.astype(mxu_dtype)            # in-kernel cast for the MXU (VPU, hidden)

    if hw_resident:
        start = k * tk
        if tk % 128 == 0:
            start = pl.multiple_of(start, 128)
        elif tk % 8 == 0:
            start = pl.multiple_of(start, 8)
        hw_k = hw_ref[pl.ds(start, tk), :]
    else:
        hw_k = hw_ref[...]

    acc_ref[...] += jnp.dot(a, hw_k, preferred_element_type=jnp.float32)

    @pl.when(k == pl.num_programs(1) - 1)
    def _finalize():
        o_ref[...] = jnp.maximum(acc_ref[...], 0.0).astype(o_ref.dtype)   # ReLU


@functools.partial(jax.jit, static_argnames=("tm", "tk", "mxu_dtype"))
def sage_layer_forward(adj, h, w, *, tm=512, tk=2048, mxu_dtype=jnp.bfloat16):
    """GraphSAGE (gcn aggregator) layer: relu((adj @ h) @ w.T).

    adj: [N, N]       h: [N, D_in]      w: [D_out, D_in] (PyTorch layout)
    """
    N, D_in = h.shape
    D_out = w.shape[0]
    out_dtype = h.dtype
    adj_itemsize = jnp.dtype(adj.dtype).itemsize
    hw_itemsize = jnp.dtype(mxu_dtype).itemsize

    # ---- tile derivation -----------------------------------------------------
    n8 = _round_up(N, 8)
    tm_eff = min(_round_up(max(tm, 8), 8), n8)
    if _cdiv(N, tm_eff) < 2 and N > 8:
        # >=2 row blocks so the "parallel" row axis can split across TCs (v7x).
        tm_eff = _round_up(_cdiv(N, 2), 8)

    if N <= tk:
        tk_eff = N                                   # full reduction extent
    else:
        tk_eff = max(128, (tk // 128) * 128)
        adj_budget = min(32 << 20, _vmem_capacity_bytes() // 2)
        while 2 * tm_eff * tk_eff * adj_itemsize > adj_budget and tk_eff > 128:
            tk_eff = max(128, ((tk_eff // 2) // 128) * 128)

    gr = _cdiv(N, tm_eff)
    gk = _cdiv(N, tk_eff)
    np_k = gk * tk_eff          # padded reduction extent (applies to hw only)

    # ---- prologue: hw = h @ W^T ----------------------------------------------
    # Pad only the small h so hw's padding rows are exact zeros; adj is never
    # padded or copied in the wrapper.
    h_p = h if np_k == N else jnp.pad(h, ((0, np_k - N), (0, 0)))
    tp = np_k if np_k <= 512 else 512
    hw = pl.pallas_call(
        _project_kernel,
        out_shape=jax.ShapeDtypeStruct((np_k, D_out), mxu_dtype),
        grid_spec=pltpu.PrefetchScalarGridSpec(
            num_scalar_prefetch=0,
            grid=(_cdiv(np_k, tp),),
            in_specs=[
                pl.BlockSpec((tp, D_in), lambda i: (i, 0)),
                pl.BlockSpec((D_out, D_in), lambda i: (0, 0)),
            ],
            out_specs=pl.BlockSpec((tp, D_out), lambda i: (i, 0)),
        ),
        compiler_params=pltpu.CompilerParams(
            dimension_semantics=("parallel",)),
    )(h_p, w)

    # ---- main kernel: out = relu(adj @ hw) -------------------------------------
    hw_resident = 2 * np_k * D_out * hw_itemsize <= (8 << 20)
    if hw_resident:
        hw_spec = pl.BlockSpec((np_k, D_out), lambda i, k: (0, 0))
        hw_live = 2 * np_k * D_out * hw_itemsize
    else:
        hw_spec = pl.BlockSpec((tk_eff, D_out), lambda i, k: (k, 0))
        hw_live = 2 * tk_eff * D_out * hw_itemsize

    needed = (2 * tm_eff * tk_eff * adj_itemsize      # adj double-buffer (f32)
              + hw_live
              + 2 * tm_eff * D_out * jnp.dtype(out_dtype).itemsize
              + tm_eff * D_out * 4)                   # accumulator scratch
    cap = _vmem_capacity_bytes()
    hard_cap = max(24 << 20, min(cap - (8 << 20), 48 << 20))
    vmem_limit = int(min(max(needed + (8 << 20), 24 << 20), hard_cap))

    kernel = functools.partial(
        _agg_relu_kernel,
        tk=tk_eff,
        n_valid_cols=(N if N % tk_eff != 0 else None),
        hw_resident=hw_resident,
        mxu_dtype=mxu_dtype)

    out = pl.pallas_call(
        kernel,
        out_shape=jax.ShapeDtypeStruct((N, D_out), out_dtype),
        grid_spec=pltpu.PrefetchScalarGridSpec(
            num_scalar_prefetch=0,
            grid=(gr, gk),
            in_specs=[
                pl.BlockSpec((tm_eff, tk_eff), lambda i, k: (i, k)),   # adj tile
                hw_spec,                                               # hw
            ],
            out_specs=pl.BlockSpec((tm_eff, D_out), lambda i, k: (i, 0)),
            scratch_shapes=[pltpu.VMEM((tm_eff, D_out), jnp.float32)],
        ),
        compiler_params=pltpu.CompilerParams(
            dimension_semantics=("parallel", "arbitrary"),
            vmem_limit_bytes=vmem_limit),
    )(adj, hw)
    return out


def _xavier_uniform(key, fan_out, fan_in, dtype=jnp.float32):
    # Matches nn.init.xavier_uniform_ for a [fan_out, fan_in] weight.
    bound = (6.0 / (fan_in + fan_out)) ** 0.5
    return jax.random.uniform(key, (fan_out, fan_in), dtype=dtype,
                              minval=-bound, maxval=bound)


def _make_inputs(key, n, d_in, d_out):
    k_adj, k_h, k_w = jax.random.split(key, 3)
    raw = (jax.random.uniform(k_adj, (n, n)) > 0.7).astype(jnp.float32)
    raw = raw + jnp.eye(n, dtype=jnp.float32)          # self loops
    adj = raw / jnp.sum(raw, axis=1, keepdims=True)    # gcn row-normalization
    h = jax.random.normal(k_h, (n, d_in), dtype=jnp.float32)
    w = _xavier_uniform(k_w, d_out, d_in)              # linear_neigh.weight
    return adj, h, w


if __name__ == "__main__":
    key = jax.random.PRNGKey(0)

    # Small shapes consistent with the module.
    N, D_in, D_out = 64, 32, 32
    adj, h, w = _make_inputs(key, N, D_in, D_out)
    ref = jnp.maximum((adj @ h) @ w.T, 0.0)

    # f32 MXU path: matches the fp32 PyTorch forward tightly.
    out_f32 = jax.block_until_ready(
        sage_layer_forward(adj, h, w, mxu_dtype=jnp.float32))
    assert out_f32.shape == (N, D_out)
    assert jnp.allclose(out_f32, ref, atol=1e-4, rtol=1e-4)

    # bf16 MXU path (default perf config): f32 accumulation; looser tolerance
    # only because inputs are rounded to bf16 before the MXU.
    out_bf16 = jax.block_until_ready(sage_layer_forward(adj, h, w))
    assert out_bf16.shape == (N, D_out)
    assert jnp.allclose(out_bf16, ref, atol=2e-2, rtol=2e-2)

    # Non-8-multiple N (single K block, full-extent reduction tile).
    N2 = 70
    adj2, h2, w2 = _make_inputs(jax.random.PRNGKey(1), N2, D_in, D_out)
    ref2 = jnp.maximum((adj2 @ h2) @ w2.T, 0.0)
    out2 = jax.block_until_ready(
        sage_layer_forward(adj2, h2, w2, mxu_dtype=jnp.float32))
    assert out2.shape == (N2, D_out)
    assert jnp.allclose(out2, ref2, atol=1e-4, rtol=1e-4)

    # Ragged reduction tail: N=200 with tk=128 exercises the in-kernel K mask,
    # multi-step accumulation, resident-hw slicing and the partial row tile.
    N3 = 200
    adj3, h3, w3 = _make_inputs(jax.random.PRNGKey(2), N3, D_in, D_out)
    ref3 = jnp.maximum((adj3 @ h3) @ w3.T, 0.0)
    out3 = jax.block_until_ready(
        sage_layer_forward(adj3, h3, w3, tm=64, tk=128, mxu_dtype=jnp.float32))
    assert out3.shape == (N3, D_out)
    assert jnp.allclose(out3, ref3, atol=1e-4, rtol=1e-4)

    print("KERNEL_OK")
</pallas_src>

<mosaic_0001>
module attributes {stable_mosaic.version = 11 : i64} {
  func.func @_project_kernel(%arg0: i32, %arg1: memref<64x32xf32, #tpu.memory_space<vmem>>, %arg2: memref<32x32xf32, #tpu.memory_space<vmem>>, %arg3: memref<64x32xf32, #tpu.memory_space<vmem>>) attributes {dimension_semantics = [#tpu.dimension_semantics<parallel>], iteration_bounds = array<i64: 1>, scalar_prefetch = 0 : i64, scratch_operands = 0 : i64, tpu.core_type = #tpu.core_type<tc>, window_params = [{transform_indices = @transform_0, window_bounds = array<i64: 64, 32>}, {pipeline_mode = #tpu.pipeline_mode<synchronous>, transform_indices = @transform_1, window_bounds = array<i64: 32, 32>}, {transform_indices = @transform_2, window_bounds = array<i64: 64, 32>}]} {
    %c0 = arith.constant 0 : index
    %c0_0 = arith.constant 0 : index
    %0 = vector.load %arg1[%c0, %c0_0] : memref<64x32xf32, #tpu.memory_space<vmem>>, vector<64x32xf32>
    %c0_1 = arith.constant 0 : index
    %c0_2 = arith.constant 0 : index
    %1 = vector.load %arg2[%c0_1, %c0_2] : memref<32x32xf32, #tpu.memory_space<vmem>>, vector<32x32xf32>
    %cst = arith.constant dense<0.000000e+00> : vector<64x32xf32>
    %2 = tpu.matmul %0, %1, %cst {dimension_numbers = #tpu.dot_dimension_numbers<[1], [1], [0], [0], [0, 0, 1, 0], [], []>} : vector<64x32xf32>, vector<32x32xf32>, vector<64x32xf32> -> vector<64x32xf32>
    %c0_3 = arith.constant 0 : index
    %c0_4 = arith.constant 0 : index
    %3 = vector.load %arg3[%c0_3, %c0_4] : memref<64x32xf32, #tpu.memory_space<vmem>>, vector<64x32xf32>
    tpu.vector_store %arg3[%c0_3, %c0_4], %2 {strides = array<i32>} : memref<64x32xf32, #tpu.memory_space<vmem>>, vector<64x32xf32>,
    return
  }
  func.func @transform_0(%arg0: i32) -> (i32, i32) {
    %c0_i32 = arith.constant 0 : i32
    %c0_i32_0 = arith.constant 0 : i32
    return %arg0, %c0_i32 : i32, i32
  }
  func.func @transform_1(%arg0: i32) -> (i32, i32) {
    %c0_i32 = arith.constant 0 : i32
    %c0_i32_0 = arith.constant 0 : i32
    %c0_i32_1 = arith.constant 0 : i32
    return %c0_i32, %c0_i32_0 : i32, i32
  }
  func.func @transform_2(%arg0: i32) -> (i32, i32) {
    %c0_i32 = arith.constant 0 : i32
    %c0_i32_0 = arith.constant 0 : i32
    return %arg0, %c0_i32 : i32, i32
  }
}

module attributes {stable_mosaic.version = 11 : i64} {
  func.func @_agg_relu_kernel(%arg0: i32, %arg1: i32, %arg2: memref<32x64xf32, #tpu.memory_space<vmem>>, %arg3: memref<64x32xf32, #tpu.memory_space<vmem>>, %arg4: memref<32x32xf32, #tpu.memory_space<vmem>>, %arg5: memref<32x32xf32, #tpu.memory_space<vmem>>) attributes {dimension_semantics = [#tpu.dimension_semantics<parallel>, #tpu.dimension_semantics<arbitrary>], iteration_bounds = array<i64: 2, 1>, scalar_prefetch = 0 : i64, scratch_operands = 1 : i64, tpu.core_type = #tpu.core_type<tc>, window_params = [{transform_indices = @transform_0, window_bounds = array<i64: 32, 64>}, {pipeline_mode = #tpu.pipeline_mode<synchronous>, transform_indices = @transform_1, window_bounds = array<i64: 64, 32>}, {transform_indices = @transform_2, window_bounds = array<i64: 32, 32>}]} {
    %c0_i32 = arith.constant 0 : i32
    %0 = arith.cmpi eq, %arg1, %c0_i32 : i32
    %1 = arith.extui %0 : i1 to i32
    %c0_i32_0 = arith.constant 0 : i32
    %2 = arith.cmpi ne, %1, %c0_i32_0 : i32
    scf.if %2 {
      %cst_9 = arith.constant 0.000000e+00 : f32
      %15 = vector.broadcast %cst_9 : f32 to vector<32x32xf32>
      %c0_10 = arith.constant 0 : index
      %c0_11 = arith.constant 0 : index
      %16 = vector.load %arg5[%c0_10, %c0_11] : memref<32x32xf32, #tpu.memory_space<vmem>>, vector<32x32xf32>
      tpu.vector_store %arg5[%c0_10, %c0_11], %15 {strides = array<i32>} : memref<32x32xf32, #tpu.memory_space<vmem>>, vector<32x32xf32>,
    } else {
    }
    %c0 = arith.constant 0 : index
    %c0_1 = arith.constant 0 : index
    %3 = vector.load %arg2[%c0, %c0_1] : memref<32x64xf32, #tpu.memory_space<vmem>>, vector<32x64xf32>
    %c64_i32 = arith.constant 64 : i32
    %4 = arith.muli %arg1, %c64_i32 : i32
    %5 = tpu.assume_multiple %4, 8 : i32
    %6 = arith.index_cast %5 : i32 to index
    %c0_2 = arith.constant 0 : index
    %7 = vector.load %arg3[%6, %c0_2] : memref<64x32xf32, #tpu.memory_space<vmem>>, vector<64x32xf32>
    %c0_3 = arith.constant 0 : index
    %c0_4 = arith.constant 0 : index
    %8 = vector.load %arg5[%c0_3, %c0_4] : memref<32x32xf32, #tpu.memory_space<vmem>>, vector<32x32xf32>
    %cst = arith.constant dense<0.000000e+00> : vector<32x32xf32>
    %9 = tpu.matmul %3, %7, %cst {dimension_numbers = #tpu.dot_dimension_numbers<[1], [0], [0], [1], [0, 0, 1, 1], [], []>} : vector<32x64xf32>, vector<64x32xf32>, vector<32x32xf32> -> vector<32x32xf32>
    %10 = arith.addf %8, %9 : vector<32x32xf32>
    %c0_5 = arith.constant 0 : index
    %c0_6 = arith.constant 0 : index
    %11 = vector.load %arg5[%c0_5, %c0_6] : memref<32x32xf32, #tpu.memory_space<vmem>>, vector<32x32xf32>
    tpu.vector_store %arg5[%c0_5, %c0_6], %10 {strides = array<i32>} : memref<32x32xf32, #tpu.memory_space<vmem>>, vector<32x32xf32>,
    %c0_i32_7 = arith.constant 0 : i32
    %12 = arith.cmpi eq, %arg1, %c0_i32_7 : i32
    %13 = arith.extui %12 : i1 to i32
    %c0_i32_8 = arith.constant 0 : i32
    %14 = arith.cmpi ne, %13, %c0_i32_8 : i32
    scf.if %14 {
      %c0_9 = arith.constant 0 : index
      %c0_10 = arith.constant 0 : index
      %15 = vector.load %arg5[%c0_9, %c0_10] : memref<32x32xf32, #tpu.memory_space<vmem>>, vector<32x32xf32>
      %cst_11 = arith.constant 0.000000e+00 : f32
      %16 = vector.broadcast %cst_11 : f32 to vector<32x32xf32>
      %17 = arith.maximumf %15, %16 : vector<32x32xf32>
      %c0_12 = arith.constant 0 : index
      %c0_13 = arith.constant 0 : index
      %18 = vector.load %arg4[%c0_12, %c0_13] : memref<32x32xf32, #tpu.memory_space<vmem>>, vector<32x32xf32>
      tpu.vector_store %arg4[%c0_12, %c0_13], %17 {strides = array<i32>} : memref<32x32xf32, #tpu.memory_space<vmem>>, vector<32x32xf32>,
    } else {
    }
    return
  }
  func.func @transform_0(%arg0: i32, %arg1: i32) -> (i32, i32) {
    %c0_i32 = arith.constant 0 : i32
    return %arg0, %arg1 : i32, i32
  }
  func.func @transform_1(%arg0: i32, %arg1: i32) -> (i32, i32) {
    %c0_i32 = arith.constant 0 : i32
    %c0_i32_0 = arith.constant 0 : i32
    %c0_i32_1 = arith.constant 0 : i32
    return %c0_i32, %c0_i32_0 : i32, i32
  }
  func.func @transform_2(%arg0: i32, %arg1: i32) -> (i32, i32) {
    %c0_i32 = arith.constant 0 : i32
    %c0_i32_0 = arith.constant 0 : i32
    return %arg0, %c0_i32 : i32, i32
  }
}

</mosaic_0001>

<llo_original>
// kernel: sage_layer_forward.2
$region0: #{sage_layer_forward.2}
  #allocation0 [shape = 'u32[]', space=smem, size = 0x4, offset = 0x4, fixed_abs, tag = 'smem constant byte address 0x4 - core index']
  #allocation1 [shape = 'u32[144,128]{1,0:T(1,128)}', space=vmem, size = 0x12000, scoped, tag = 'internal scratch']
  %s0 = inlined_call_operand.vmem [shape: f32[64,32], index: 0, kind: input, shape index: {}]
  %s1 = inlined_call_operand.vmem [shape: f32[32,32], index: 1, kind: input, shape index: {}]
  %s2 = inlined_call_operand.vmem [shape: f32[64,32], index: 2, kind: output, shape index: {}]
  %s3 = sld [smem:[#allocation0]]
  $region18: #{sage_layer_forward.2} parent=0
    _
  %s5 = ssub.s32 1, %s3
  %s6 = scalar_select 0, %s5, %s3
  // Predicated region
  $region2: #{sage_layer_forward.2} parent=0 // pred_check
    _
  $region3: #{sage_layer_forward.2} parent=0 // pred_check_branch
    %8 = sbr.rel (0) target = $region5
  $region4: #{sage_layer_forward.2} parent=0 // pred_region
    _
  $region5: #{sage_layer_forward.2} parent=0 // pred_fallthru
    _
  // Predicated region
  $region6: #{sage_layer_forward.2} parent=0 // pred_check
    _
  $region7: #{sage_layer_forward.2} parent=0 // pred_check_branch
    %10 = sbr.rel (0) target = $region9
  $region8: #{sage_layer_forward.2} parent=0 // pred_region
    _
  $region9: #{sage_layer_forward.2} parent=0 // pred_fallthru
    _
  %v11 = vld [vmem:[%s0] sm:$0xff]
  %v12 = vld [vmem:[%s0 + $0x8] sm:$0xff]
  %v13 = vld [vmem:[%s0 + $0x10] sm:$0xff]
  %v14 = vld [vmem:[%s0 + $0x18] sm:$0xff]
  %v15 = vld [vmem:[%s0 + $0x20] sm:$0xff]
  %v16 = vld [vmem:[%s0 + $0x28] sm:$0xff]
  %v17 = vld [vmem:[%s0 + $0x30] sm:$0xff]
  %v18 = vld [vmem:[%s0 + $0x38] sm:$0xff]
  %v19 = vld [vmem:[%s1] sm:$0xff]
  %v20 = vld [vmem:[%s1 + $0x8] sm:$0xff]
  %v21 = vld [vmem:[%s1 + $0x10] sm:$0xff]
  %v22 = vld [vmem:[%s1 + $0x18] sm:$0xff]
  %vm23 = vcmask 261120
  %v25 = vsel %vm23, %v11, 0
  %v28 = vsel %vm23, %v12, 0
  %v31 = vsel %vm23, %v13, 0
  %v34 = vsel %vm23, %v14, 0
  %v37 = vsel %vm23, %v15, 0
  %v40 = vsel %vm23, %v16, 0
  %v43 = vsel %vm23, %v17, 0
  %v46 = vsel %vm23, %v18, 0
  %v49 = vsel %vm23, %v19, 0
  %v52 = vsel %vm23, %v20, 0
  %v55 = vsel %vm23, %v21, 0
  %v58 = vsel %vm23, %v22, 0
  %60 = vmatprep.subr.mxu0 0.0
  %61 = vmatpush1.xpose.msra.mxu0 %v49
  %62 = vmatprep.subr.mxu0 0.0
  %63 = vmatpush1.xpose.msra.mxu0 %v52
  %64 = vmatprep.subr.mxu0 0.0
  %65 = vmatpush1.xpose.msra.mxu0 %v55
  %66 = vmatprep.subr.mxu0 0.0
  %67 = vmatpush1.xpose.msra.mxu0 %v58
  %68 = vmatprep.subr.mxu0 0.0
  %69 = vmatpush1.xpose.msra.mxu0 0.0
  %70 = vmatprep.subr.mxu0 0.0
  %71 = vmatpush1.xpose.msra.mxu0 0.0
  %72 = vmatprep.subr.mxu0 0.0
  %73 = vmatpush1.xpose.msra.mxu0 0.0
  %74 = vmatprep.subr.mxu0 0.0
  %75 = vmatpush1.xpose.msra.mxu0 0.0
  %76 = vmatprep.subr.mxu0 0.0
  %77 = vmatpush1.xpose.msra.mxu0 0.0
  %78 = vmatprep.subr.mxu0 0.0
  %79 = vmatpush1.xpose.msra.mxu0 0.0
  %80 = vmatprep.subr.mxu0 0.0
  %81 = vmatpush1.xpose.msra.mxu0 0.0
  %82 = vmatprep.subr.mxu0 0.0
  %83 = vmatpush1.xpose.msra.mxu0 0.0
  %84 = vmatprep.subr.mxu0 0.0
  %85 = vmatpush1.xpose.msra.mxu0 0.0
  %86 = vmatprep.subr.mxu0 0.0
  %87 = vmatpush1.xpose.msra.mxu0 0.0
  %88 = vmatprep.subr.mxu0 0.0
  %89 = vmatpush1.xpose.msra.mxu0 0.0
  %90 = vmatprep.subr.mxu0 0.0
  %91 = vmatpush1.xpose.msra.mxu0 0.0
  %92 = vmatprep.subr.mxu0 0.0
  %93 = vmatpush1.xpose.msra.mxu0 0.0
  %94 = vmatprep.subr.mxu0 0.0
  %95 = vmatpush1.xpose.msra.mxu0 0.0
  %96 = vmatprep.subr.mxu0 0.0
  %97 = vmatpush1.xpose.msra.mxu0 0.0
  %98 = vmatprep.subr.mxu0 0.0
  %99 = vmatpush1.xpose.msra.mxu0 0.0
  %100 = vmatprep.subr.mxu0 0.0
  %101 = vmatpush1.xpose.msra.mxu0 0.0
  %102 = vmatprep.subr.mxu0 0.0
  %103 = vmatpush1.xpose.msra.mxu0 0.0
  %104 = vmatprep.subr.mxu0 0.0
  %105 = vmatpush1.xpose.msra.mxu0 0.0
  %106 = vmatprep.subr.mxu0 0.0
  %107 = vmatpush1.xpose.msra.mxu0 0.0
  %108 = vmatprep.subr.mxu0 0.0
  %109 = vmatpush1.xpose.msra.mxu0 0.0
  %110 = vmatprep.subr.mxu0 0.0
  %111 = vmatpush1.xpose.msra.mxu0 0.0
  %112 = vmatprep.subr.mxu0 0.0
  %113 = vmatpush1.xpose.msra.mxu0 0.0
  %114 = vmatprep.subr.mxu0 0.0
  %115 = vmatpush1.xpose.msra.mxu0 0.0
  %116 = vmatprep.subr.mxu0 0.0
  %117 = vmatpush1.xpose.msra.mxu0 0.0
  %118 = vmatprep.subr.mxu0 0.0
  %119 = vmatpush1.xpose.msra.mxu0 0.0
  %120 = vmatprep.subr.mxu0 0.0
  %121 = vmatpush1.xpose.msra.mxu0 0.0
  %122 = vmatprep.subr.mxu0 0.0
  %123 = vmatpush1.xpose.msra.mxu0 0.0
  %124 = vmatprep.mubr.f32.mxu0 0.0
  %125 = vmatmul.mubr.f32.gmra.mrb[0].mxu0 %v25
  %v126 = vpop.f32.mrb[0].mxu0
  %v127 = vadd.f32 0.0, %v126
  %v128 = vpop.f32.mrb[0].mxu0
  %129 = vmatprep.mubr.f32.mxu0 0.0
  %130 = vmatmul.mubr.f32.gmra.mrb[0].mxu0 %v28
  %v131 = vpop.f32.mrb[0].mxu0
  %v132 = vadd.f32 0.0, %v131
  %v133 = vpop.f32.mrb[0].mxu0
  %134 = vmatprep.mubr.f32.mxu0 0.0
  %135 = vmatmul.mubr.f32.gmra.mrb[0].mxu0 %v31
  %v136 = vpop.f32.mrb[0].mxu0
  %v137 = vadd.f32 0.0, %v136
  %v138 = vpop.f32.mrb[0].mxu0
  %139 = vmatprep.mubr.f32.mxu0 0.0
  %140 = vmatmul.mubr.f32.gmra.mrb[0].mxu0 %v34
  %v141 = vpop.f32.mrb[0].mxu0
  %v142 = vadd.f32 0.0, %v141
  %v143 = vpop.f32.mrb[0].mxu0
  %144 = vmatprep.mubr.f32.mxu0 0.0
  %145 = vmatmul.mubr.f32.gmra.mrb[0].mxu0 %v37
  %v146 = vpop.f32.mrb[0].mxu0
  %v147 = vadd.f32 0.0, %v146
  %v148 = vpop.f32.mrb[0].mxu0
  %149 = vmatprep.mubr.f32.mxu0 0.0
  %150 = vmatmul.mubr.f32.gmra.mrb[0].mxu0 %v40
  %v151 = vpop.f32.mrb[0].mxu0
  %v152 = vadd.f32 0.0, %v151
  %v153 = vpop.f32.mrb[0].mxu0
  %154 = vmatprep.mubr.f32.mxu0 0.0
  %155 = vmatmul.mubr.f32.gmra.mrb[0].mxu0 %v43
  %v156 = vpop.f32.mrb[0].mxu0
  %v157 = vadd.f32 0.0, %v156
  %v158 = vpop.f32.mrb[0].mxu0
  %159 = vmatprep.mubr.f32.mxu0 0.0
  %160 = vmatmul.mubr.f32.gmra.mrb[0].mxu0 %v46
  %v161 = vpop.f32.mrb[0].mxu0
  %v162 = vadd.f32 0.0, %v161
  %v163 = vpop.f32.mrb[0].mxu0
  %164 = vdwg.mxu0
  %165 = vst.msk [vmem:[%s2] sm:$0xff] %vm23, %v127
  %166 = vst.msk [vmem:[%s2 + $0x8] sm:$0xff] %vm23, %v132
  %167 = vst.msk [vmem:[%s2 + $0x10] sm:$0xff] %vm23, %v137
  %168 = vst.msk [vmem:[%s2 + $0x18] sm:$0xff] %vm23, %v142
  %169 = vst.msk [vmem:[%s2 + $0x20] sm:$0xff] %vm23, %v147
  %170 = vst.msk [vmem:[%s2 + $0x28] sm:$0xff] %vm23, %v152
  %171 = vst.msk [vmem:[%s2 + $0x30] sm:$0xff] %vm23, %v157
  %172 = vst.msk [vmem:[%s2 + $0x38] sm:$0xff] %vm23, %v162
  // Predicated region
  $region10: #{sage_layer_forward.2} parent=0 // pred_check
    _
  $region11: #{sage_layer_forward.2} parent=0 // pred_check_branch
    %174 = sbr.rel (0) target = $region13
  $region12: #{sage_layer_forward.2} parent=0 // pred_region
    _
  $region13: #{sage_layer_forward.2} parent=0 // pred_fallthru
    _
  // Predicated region
  $region14: #{sage_layer_forward.2} parent=0 // pred_check
    _
  $region15: #{sage_layer_forward.2} parent=0 // pred_check_branch
    %176 = sbr.rel (0) target = $region17
  $region16: #{sage_layer_forward.2} parent=0 // pred_region
    _
  $region17: #{sage_layer_forward.2} parent=0 // pred_fallthru
    _

// kernel: sage_layer_forward.3
$region0: #{sage_layer_forward.3}
  #allocation0 [shape = 'u32[]', space=smem, size = 0x4, offset = 0x4, fixed_abs, tag = 'smem constant byte address 0x4 - core index']
  #allocation1 [shape = 'u32[144,128]{1,0:T(1,128)}', space=vmem, size = 0x12000, scoped, tag = 'internal scratch']
  #allocation2 [shape = 'f32[32,32]{1,0:T(8,128)}', space=vmem, size = 0x4000, scoped, tag = 'scratch operand']
  %s0 = inlined_call_operand.vmem [shape: f32[64,64], index: 0, kind: input, shape index: {}]
  %s1 = inlined_call_operand.vmem [shape: f32[64,32], index: 1, kind: input, shape index: {}]
  %s2 = inlined_call_operand.vmem [shape: f32[64,32], index: 2, kind: output, shape index: {}]
  %s3 = sld [smem:[#allocation0]]
  $region49: #{sage_layer_forward.3} parent=0
    _
  %s5 = ssub.s32 1, %s3
  %s6 = scalar_select 0, %s5, %s3
  loop: start=0, step=1, limit=4
  $region2: #{sage_layer_forward.3} parent=0 // loop_pre_header
    _
  $region3: #{sage_layer_forward.3} parent=0 // loop_header
    %s8 = sphi 0, %s12
    %p9 = scmp.ge.s32.totalorder %s8, 4
    %s15 = sphi 0, %s27
    %s16 = sphi 0, %s23
    %s17 = sphi 0, %s15
    %s18 = sphi 0, %s16
    %s19 = sphi 0, %s17
    %s20 = sphi 0, %s18
    %s32 = sphi 0, %s34
    %s35 = sphi 0, %s32
    %s36 = sphi 0, %s35
    %s52 = sphi 0, %s36
    %s56 = sphi 0, %s56
    %s58 = sphi 0, %s56
    %s59 = sphi 0, %s58
    %s73 = sphi 0, %s59
    %s79 = sphi 0, %s81
    %s82 = sphi 0, %s79
    %s83 = sphi 0, %s82
    %s99 = sphi 0, %s83
  $region4: #{sage_layer_forward.3} parent=0 // loop_header_branch
    %11 = sbr.rel (%p9) target = $region8
  $region5: #{sage_layer_forward.3} parent=0 // loop_body
    %s13 = ssub.s32 %s8, 1
    %s14 = ssub.s32 %s8, 2
    %s21 = sadd.s32 1, %s16
    %p22 = scmp.ge.s32.totalorder %s21, 1
    %s23 = scalar_select %p22, 0, %s21
    %s24 = sadd.s32 1, %s15
    %s25 = scalar_select %p22, %s24, %s15
    %p26 = scmp.ge.s32.totalorder %s25, 2
    %s27 = scalar_select %p26, 0, %s25
    %s28 = ssub.s32 %s15, %s27
    %s29 = ssub.s32 %s16, %s23
    %s30 = sor.u32 %s28, %s29
    %p31 = scmp.eq.s32.totalorder %s30, 0
    %s33 = sadd.s32 %s32, 1
    %s34 = scalar_select %p31, %s32, %s33
    %p37 = pneg %p31
    %p38 = scmp.eq.s32.totalorder %s8, 1
    %p39 = por %p37, %p38
    %p40 = scmp.ne.s32.totalorder %s32, %s35
    %p41 = scmp.eq.s32.totalorder %s8, 0
    %p42 = por %p40, %p41
    %p43 = scmp.ne.s32.totalorder %s32, %s35
    %p44 = scmp.eq.s32.totalorder %s13, 1
    %p45 = por %p43, %p44
    %p46 = scmp.ne.s32.totalorder %s35, %s36
    %p47 = scmp.eq.s32.totalorder %s13, 0
    %p48 = por %p46, %p47
    %p49 = scmp.ne.s32.totalorder %s35, %s36
    %p50 = scmp.eq.s32.totalorder %s14, 1
    %p51 = por %p49, %p50
    %p53 = scmp.ne.s32.totalorder %s36, %s52
    %p54 = scmp.eq.s32.totalorder %s14, 0
    %p55 = por %p53, %p54
    %s57 = sadd.s32 %s56, 1
    %p60 = scmp.eq.s32.totalorder %s8, 1
    %p61 = scmp.ne.s32.totalorder %s56, %s58
    %p62 = scmp.eq.s32.totalorder %s8, 0
    %p63 = por %p61, %p62
    %p64 = scmp.ne.s32.totalorder %s56, %s58
    %p65 = scmp.eq.s32.totalorder %s13, 1
    %p66 = por %p64, %p65
    %p67 = scmp.ne.s32.totalorder %s58, %s59
    %p68 = scmp.eq.s32.totalorder %s13, 0
    %p69 = por %p67, %p68
    %p70 = scmp.ne.s32.totalorder %s58, %s59
    %p71 = scmp.eq.s32.totalorder %s14, 1
    %p72 = por %p70, %p71
    %p74 = scmp.ne.s32.totalorder %s59, %s73
    %p75 = scmp.eq.s32.totalorder %s14, 0
    %p76 = por %p74, %p75
    %s77 = ssub.s32 %s15, %s27
    %p78 = scmp.eq.s32.totalorder %s77, 0
    %s80 = sadd.s32 %s79, 1
    %s81 = scalar_select %p78, %s79, %s80
    %p84 = pneg %p78
    %p85 = scmp.eq.s32.totalorder %s8, 1
    %p86 = por %p84, %p85
    %p87 = scmp.ne.s32.totalorder %s79, %s82
    %p88 = scmp.eq.s32.totalorder %s8, 0
    %p89 = por %p87, %p88
    %p90 = scmp.ne.s32.totalorder %s79, %s82
    %p91 = scmp.eq.s32.totalorder %s13, 1
    %p92 = por %p90, %p91
    %p93 = scmp.ne.s32.totalorder %s82, %s83
    %p94 = scmp.eq.s32.totalorder %s13, 0
    %p95 = por %p93, %p94
    %p96 = scmp.ne.s32.totalorder %s82, %s83
    %p97 = scmp.eq.s32.totalorder %s14, 1
    %p98 = por %p96, %p97
    %p100 = scmp.ne.s32.totalorder %s83, %s99
    %p101 = scmp.eq.s32.totalorder %s14, 0
    %p102 = por %p100, %p101
    %p103 = scmp.le.s32.totalorder 1, %s8
    %p104 = scmp.lt.s32.totalorder %s8, 3
    %p105 = pnand %p103, %p104
    %p106 = pneg %p105
    // Predicated region
    $region9: #{sage_layer_forward.3} parent=5 // pred_check
      _
    $region10: #{sage_layer_forward.3} parent=5 // pred_check_branch
      %108 = sbr.rel (%p105) target = $region12
    $region11: #{sage_layer_forward.3} parent=5 // pred_region
      %s109 = ssub.s32 %s8, 1
      // Predicated region
      $region13: #{sage_layer_forward.3} parent=11 // pred_check
        %p110 = pneg %p69
      $region14: #{sage_layer_forward.3} parent=11 // pred_check_branch
        %112 = sbr.rel (%p110) target = $region16
      $region15: #{sage_layer_forward.3} parent=11 // pred_region
        _
      $region16: #{sage_layer_forward.3} parent=11 // pred_fallthru
        _
    $region12: #{sage_layer_forward.3} parent=5 // pred_fallthru
      _
    %p113 = scmp.lt.s32.totalorder %s8, 2
    // Predicated region
    $region17: #{sage_layer_forward.3} parent=5 // pred_check
      %p114 = pneg %p113
    $region18: #{sage_layer_forward.3} parent=5 // pred_check_branch
      %116 = sbr.rel (%p114) target = $region20
    $region19: #{sage_layer_forward.3} parent=5 // pred_region
      // Predicated region
      $region21: #{sage_layer_forward.3} parent=19 // pred_check
        %p117 = pneg %p42
      $region22: #{sage_layer_forward.3} parent=19 // pred_check_branch
        %119 = sbr.rel (%p117) target = $region24
      $region23: #{sage_layer_forward.3} parent=19 // pred_region
        %s120 = smul.u32 4, %s15
        %p121 = scmp.lt.s32.totalorder %s120, 7
        %s122 = scalar_select %p121, %s120, 7
        %p123 = scmp.lt.s32.totalorder %s16, 0
        %s124 = scalar_select %p123, %s16, 0
        %s125 = sadd.s32 %s124, %s122
        %s126 = smul.addr %s125, 8
        %s127 = scalar_lea.vmem %s0, %s126
        %s128 = smul.u32 4, %s15
      $region24: #{sage_layer_forward.3} parent=19 // pred_fallthru
        _
    $region20: #{sage_layer_forward.3} parent=5 // pred_fallthru
      _
    %p129 = scmp.le.s32.totalorder 1, %s8
    %p130 = scmp.lt.s32.totalorder %s8, 3
    %p131 = pnand %p129, %p130
    %p132 = pneg %p131
    // Predicated region
    $region25: #{sage_layer_forward.3} parent=5 // pred_check
      _
    $region26: #{sage_layer_forward.3} parent=5 // pred_check_branch
      %134 = sbr.rel (%p131) target = $region28
    $region27: #{sage_layer_forward.3} parent=5 // pred_region
      %s135 = ssub.s32 %s8, 1
      %s136 = smul.u32 4, %s17
      %p137 = scmp.lt.s32.totalorder %s136, 7
      %s138 = scalar_select %p137, %s136, 7
      %p139 = scmp.lt.s32.totalorder %s18, 0
      %s140 = scalar_select %p139, %s18, 0
      %s141 = sadd.s32 %s140, %s138
      %s142 = smul.addr %s141, 8
      %s143 = scalar_lea.vmem %s0, %s142
      %p144 = pneg %p48
      %p145 = pneg %p45
      %p146 = pneg %p69
      %p147 = pneg %p66
      %p148 = pneg %p95
      %p149 = pneg %p92
      %s150 = smul.u32 4, %s17
      %p151 = scmp.lt.s32.totalorder %s150, 7
      %s152 = scalar_select %p151, %s150, 7
      %s153 = smul.addr %s152, 8
      %s154 = scalar_lea.vmem %s2, %s153
      %s155 = smul.u32 4, %s17
      %p156 = scmp.lt.s32.totalorder %s155, 7
      %s157 = scalar_select %p156, %s155, 7
      %p158 = scmp.lt.s32.totalorder %s18, 0
      %s159 = scalar_select %p158, %s18, 0
      %s160 = sadd.s32 %s159, %s157
      %s161 = smul.addr %s160, 8
      %s162 = scalar_lea.vmem %s0, %s161
      %s163 = smul.u32 4, %s17
      %s164 = smul.u32 4, %s17
      %p165 = scmp.lt.s32.totalorder %s164, 7
      %s166 = scalar_select %p165, %s164, 7
      %s167 = smul.addr %s166, 8
      %s168 = scalar_lea.vmem %s2, %s167
      %s169 = smul.u32 4, %s17
      %p170 = scmp.eq.s32.totalorder %s18, 0
      // Predicated region
      $region29: #{sage_layer_forward.3} parent=27 // pred_check
        %p171 = pneg %p170
      $region30: #{sage_layer_forward.3} parent=27 // pred_check_branch
        %173 = sbr.rel (%p171) target = $region32
      $region31: #{sage_layer_forward.3} parent=27 // pred_region
        %vm174 = vcmask 261120
        %175 = vst.msk [vmem:[#allocation2] sm:$0xff] %vm174, 0.0
        %176 = vst.msk [vmem:[#allocation2 + $0x8] sm:$0xff] %vm174, 0.0
        %177 = vst.msk [vmem:[#allocation2 + $0x10] sm:$0xff] %vm174, 0.0
        %178 = vst.msk [vmem:[#allocation2 + $0x18] sm:$0xff] %vm174, 0.0
      $region32: #{sage_layer_forward.3} parent=27 // pred_fallthru
        _
      %v179 = vld [vmem:[%s162] sm:$0xff]
      %v180 = vld [vmem:[%s162 + $0x8] sm:$0xff]
      %v181 = vld [vmem:[%s162 + $0x10] sm:$0xff]
      %v182 = vld [vmem:[%s162 + $0x18] sm:$0xff]
      %s183 = smul.u32 %s18, 64
      %s184 = scalar_lea.vmem %s1, %s183
      %v185 = vld [vmem:[%s184] sm:$0xff]
      %v186 = vld [vmem:[%s184 + $0x8] sm:$0xff]
      %v187 = vld [vmem:[%s184 + $0x10] sm:$0xff]
      %v188 = vld [vmem:[%s184 + $0x18] sm:$0xff]
      %v189 = vld [vmem:[%s184 + $0x20] sm:$0xff]
      %v190 = vld [vmem:[%s184 + $0x28] sm:$0xff]
      %v191 = vld [vmem:[%s184 + $0x30] sm:$0xff]
      %v192 = vld [vmem:[%s184 + $0x38] sm:$0xff]
      %v193 = vld [vmem:[#allocation2] sm:$0xff]
      %v194 = vld [vmem:[#allocation2 + $0x8] sm:$0xff]
      %v195 = vld [vmem:[#allocation2 + $0x10] sm:$0xff]
      %v196 = vld [vmem:[#allocation2 + $0x18] sm:$0xff]
      %vm197 = vcmask 523264
      %v199 = vsel %vm197, %v179, 0
      %v202 = vsel %vm197, %v180, 0
      %v205 = vsel %vm197, %v181, 0
      %v208 = vsel %vm197, %v182, 0
      %210 = vmatprep.subr.mxu0 0.0
      %211 = vmatpush1.msra.mxu0 %v185
      %212 = vmatprep.subr.mxu0 0.0
      %213 = vmatpush1.msra.mxu0 %v186
      %214 = vmatprep.subr.mxu0 0.0
      %215 = vmatpush1.msra.mxu0 %v187
      %216 = vmatprep.subr.mxu0 0.0
      %217 = vmatpush1.msra.mxu0 %v188
      %218 = vmatprep.subr.mxu0 0.0
      %219 = vmatpush1.msra.mxu0 %v189
      %220 = vmatprep.subr.mxu0 0.0
      %221 = vmatpush1.msra.mxu0 %v190
      %222 = vmatprep.subr.mxu0 0.0
      %223 = vmatpush1.msra.mxu0 %v191
      %224 = vmatprep.subr.mxu0 0.0
      %225 = vmatpush1.msra.mxu0 %v192
      %226 = vmatprep.subr.mxu0 0.0
      %227 = vmatpush1.msra.mxu0 0.0
      %228 = vmatprep.subr.mxu0 0.0
      %229 = vmatpush1.msra.mxu0 0.0
      %230 = vmatprep.subr.mxu0 0.0
      %231 = vmatpush1.msra.mxu0 0.0
      %232 = vmatprep.subr.mxu0 0.0
      %233 = vmatpush1.msra.mxu0 0.0
      %234 = vmatprep.subr.mxu0 0.0
      %235 = vmatpush1.msra.mxu0 0.0
      %236 = vmatprep.subr.mxu0 0.0
      %237 = vmatpush1.msra.mxu0 0.0
      %238 = vmatprep.subr.mxu0 0.0
      %239 = vmatpush1.msra.mxu0 0.0
      %240 = vmatprep.subr.mxu0 0.0
      %241 = vmatpush1.msra.mxu0 0.0
      %242 = vmatprep.subr.mxu0 0.0
      %243 = vmatpush1.msra.mxu0 0.0
      %244 = vmatprep.subr.mxu0 0.0
      %245 = vmatpush1.msra.mxu0 0.0
      %246 = vmatprep.subr.mxu0 0.0
      %247 = vmatpush1.msra.mxu0 0.0
      %248 = vmatprep.subr.mxu0 0.0
      %249 = vmatpush1.msra.mxu0 0.0
      %250 = vmatprep.subr.mxu0 0.0
      %251 = vmatpush1.msra.mxu0 0.0
      %252 = vmatprep.subr.mxu0 0.0
      %253 = vmatpush1.msra.mxu0 0.0
      %254 = vmatprep.subr.mxu0 0.0
      %255 = vmatpush1.msra.mxu0 0.0
      %256 = vmatprep.subr.mxu0 0.0
      %257 = vmatpush1.msra.mxu0 0.0
      %258 = vmatprep.subr.mxu0 0.0
      %259 = vmatpush1.msra.mxu0 0.0
      %260 = vmatprep.subr.mxu0 0.0
      %261 = vmatpush1.msra.mxu0 0.0
      %262 = vmatprep.subr.mxu0 0.0
      %263 = vmatpush1.msra.mxu0 0.0
      %264 = vmatprep.subr.mxu0 0.0
      %265 = vmatpush1.msra.mxu0 0.0
      %266 = vmatprep.subr.mxu0 0.0
      %267 = vmatpush1.msra.mxu0 0.0
      %268 = vmatprep.subr.mxu0 0.0
      %269 = vmatpush1.msra.mxu0 0.0
      %270 = vmatprep.subr.mxu0 0.0
      %271 = vmatpush1.msra.mxu0 0.0
      %272 = vmatprep.subr.mxu0 0.0
      %273 = vmatpush1.msra.mxu0 0.0
      %274 = vmatprep.mubr.f32.mxu0 0.0
      %275 = vmatmul.mubr.f32.gmra.mrb[0].mxu0 %v199
      %v276 = vpop.f32.mrb[0].mxu0
      %v277 = vadd.f32 0.0, %v276
      %v278 = vpop.f32.mrb[0].mxu0
      %279 = vmatprep.mubr.f32.mxu0 0.0
      %280 = vmatmul.mubr.f32.gmra.mrb[0].mxu0 %v202
      %v281 = vpop.f32.mrb[0].mxu0
      %v282 = vadd.f32 0.0, %v281
      %v283 = vpop.f32.mrb[0].mxu0
      %284 = vmatprep.mubr.f32.mxu0 0.0
      %285 = vmatmul.mubr.f32.gmra.mrb[0].mxu0 %v205
      %v286 = vpop.f32.mrb[0].mxu0
      %v287 = vadd.f32 0.0, %v286
      %v288 = vpop.f32.mrb[0].mxu0
      %289 = vmatprep.mubr.f32.mxu0 0.0
      %290 = vmatmul.mubr.f32.gmra.mrb[0].mxu0 %v208
      %v291 = vpop.f32.mrb[0].mxu0
      %v292 = vadd.f32 0.0, %v291
      %v293 = vpop.f32.mrb[0].mxu0
      %294 = vdwg.mxu0
      %v295 = vadd.f32 %v193, %v277
      %v296 = vadd.f32 %v194, %v282
      %v297 = vadd.f32 %v195, %v287
      %v298 = vadd.f32 %v196, %v292
      %vm299 = vcmask 261120
      %300 = vst.msk [vmem:[#allocation2] sm:$0xff] %vm299, %v295
      %301 = vst.msk [vmem:[#allocation2 + $0x8] sm:$0xff] %vm299, %v296
      %302 = vst.msk [vmem:[#allocation2 + $0x10] sm:$0xff] %vm299, %v297
      %303 = vst.msk [vmem:[#allocation2 + $0x18] sm:$0xff] %vm299, %v298
      // Predicated region
      $region33: #{sage_layer_forward.3} parent=27 // pred_check
        %p304 = pneg %p170
      $region34: #{sage_layer_forward.3} parent=27 // pred_check_branch
        %306 = sbr.rel (%p304) target = $region36
      $region35: #{sage_layer_forward.3} parent=27 // pred_region
        %v307 = vld [vmem:[#allocation2] sm:$0xff]
        %v308 = vld [vmem:[#allocation2 + $0x8] sm:$0xff]
        %v309 = vld [vmem:[#allocation2 + $0x10] sm:$0xff]
        %v310 = vld [vmem:[#allocation2 + $0x18] sm:$0xff]
        %v311 = vmax.f32 %v307, 0.0
        %v312 = vmax.f32 %v308, 0.0
        %v313 = vmax.f32 %v309, 0.0
        %v314 = vmax.f32 %v310, 0.0
        %315 = vst.msk [vmem:[%s168] sm:$0xff] %vm299, %v311
        %316 = vst.msk [vmem:[%s168 + $0x8] sm:$0xff] %vm299, %v312
        %317 = vst.msk [vmem:[%s168 + $0x10] sm:$0xff] %vm299, %v313
        %318 = vst.msk [vmem:[%s168 + $0x18] sm:$0xff] %vm299, %v314
      $region36: #{sage_layer_forward.3} parent=27 // pred_fallthru
        _
      %s319 = smul.u32 4, %s17
      %p320 = scmp.lt.s32.totalorder %s319, 7
      %s321 = scalar_select %p320, %s319, 7
      %s322 = smul.addr %s321, 8
      %s323 = scalar_lea.vmem %s2, %s322
      // Predicated region
      $region37: #{sage_layer_forward.3} parent=27 // pred_check
        %p324 = pneg %p92
      $region38: #{sage_layer_forward.3} parent=27 // pred_check_branch
        %326 = sbr.rel (%p324) target = $region40
      $region39: #{sage_layer_forward.3} parent=27 // pred_region
        %s327 = smul.u32 4, %s17
      $region40: #{sage_layer_forward.3} parent=27 // pred_fallthru
        _
    $region28: #{sage_layer_forward.3} parent=5 // pred_fallthru
      _
    %p328 = scmp.le.s32.totalorder 2, %s8
    // Predicated region
    $region41: #{sage_layer_forward.3} parent=5 // pred_check
      %p329 = pneg %p328
    $region42: #{sage_layer_forward.3} parent=5 // pred_check_branch
      %331 = sbr.rel (%p329) target = $region44
    $region43: #{sage_layer_forward.3} parent=5 // pred_region
      %s332 = ssub.s32 %s8, 2
      // Predicated region
      $region45: #{sage_layer_forward.3} parent=43 // pred_check
        %p333 = pneg %p98
      $region46: #{sage_layer_forward.3} parent=43 // pred_check_branch
        %335 = sbr.rel (%p333) target = $region48
      $region47: #{sage_layer_forward.3} parent=43 // pred_region
        %s336 = smul.u32 4, %s19
        %p337 = scmp.lt.s32.totalorder %s336, 7
        %s338 = scalar_select %p337, %s336, 7
        %s339 = smul.addr %s338, 8
        %s340 = scalar_lea.vmem %s2, %s339
      $region48: #{sage_layer_forward.3} parent=43 // pred_fallthru
        _
    $region44: #{sage_layer_forward.3} parent=5 // pred_fallthru
      _
  $region6: #{sage_layer_forward.3} parent=0 // loop_footer
    %s12 = sadd.s32 1, %s8
  $region7: #{sage_layer_forward.3} parent=0 // loop_footer_branch
    %7 = sbr.rel target = $region3
  $region8: #{sage_layer_forward.3} parent=0 // loop_exit
    _

</llo_original>
